<compile_context>
chip_gen: v7x
topology: tpu7x:2x2x1
jax: 0.10.0
libtpu: 0.0.40
codegen_flags: <defaults>
</compile_context>

<pallas_src>
import functools
import math

import jax
import jax.numpy as jnp
from jax.experimental import pallas as pl
from jax.experimental.pallas import tpu as pltpu


# --------------------------------------------------------------------------
# Small helpers
# --------------------------------------------------------------------------
def _round_up(x, m):
    return (x + m - 1) // m * m


def _vmem_limit_bytes():
    """Generation-aware VMEM budget (~80% of physical capacity)."""
    cap = 64 * 1024 * 1024
    try:
        info = pltpu.get_tpu_info()
        cap = getattr(info, "vmem_capacity_bytes", None) or cap
    except Exception:
        pass
    return max(32 * 1024 * 1024, min(int(cap * 0.8), 112 * 1024 * 1024))


def _choose_tile_n(hidden_padded, k_dim, vmem_budget):
    """Gate/H tile width (multiple of 128), budgeted against VMEM."""
    tn = 128
    for t in (1024, 512, 256):
        # double-buffered bf16 weight blocks (Wx + Wh) get at most half of VMEM
        if hidden_padded % t == 0 and (2 * k_dim * 4 * t * 2) <= vmem_budget // 2:
            tn = t
            break
    # Prefer >= 2 H-tiles when Hp allows, so a v7x megacore shards distinct
    # weight columns per core (halved per-core weight DMA / VMEM footprint).
    if hidden_padded // tn < 2 <= hidden_padded // 128:
        tn = max(128, tn // 2)
    return tn


def _choose_tile_m(batch):
    """Batch tile: minimise padding, never below 16 (bf16 (16,128) tile)."""
    if batch <= 16:
        return 16
    if batch % 128 == 0:
        return 128          # native MXU pass on v5e, fine everywhere
    best_t, best_pad = 16, (-batch) % 16
    for t in (256, 128, 64, 32, 16):
        pad = (-batch) % t
        if pad < best_pad or (pad == best_pad and t > best_t):
            best_t, best_pad = t, pad
    return best_t


def _sigmoid(x):
    # exp and the approximate reciprocal both ride the EUP slot, keeping the
    # VALU free for the f32 gate math (vs. the divide in jax.nn.sigmoid).
    return pl.reciprocal(1.0 + jnp.exp(-x), approx=True)


# --------------------------------------------------------------------------
# Kernels
# --------------------------------------------------------------------------
def lstm_step_kernel(x_ref, h_ref, wx_ref, wh_ref, b_ref, c_ref, hy_ref, cy_ref):
    # x_ref : (tm, I)   bf16      h_ref : (tm, Hp) bf16
    # wx_ref: (I, 4*tn) bf16      wh_ref: (Hp, 4*tn) bf16
    # b_ref : (1, 4*tn) f32       c_ref : (tm, tn) f32
    gates = jnp.dot(x_ref[...], wx_ref[...], preferred_element_type=jnp.float32)
    gates = gates + jnp.dot(h_ref[...], wh_ref[...],
                            preferred_element_type=jnp.float32)
    gates = gates + b_ref[...]

    tn = cy_ref.shape[1]
    ingate     = _sigmoid(gates[:, 0 * tn:1 * tn])
    forgetgate = _sigmoid(gates[:, 1 * tn:2 * tn])
    cellgate   = jnp.tanh(gates[:, 2 * tn:3 * tn])
    outgate    = _sigmoid(gates[:, 3 * tn:4 * tn])

    cy = c_ref[...] * forgetgate + ingate * cellgate
    hy_ref[...] = (outgate * jnp.tanh(cy)).astype(hy_ref.dtype)   # bf16 store
    cy_ref[...] = cy                                              # f32 cell state


def lstm_seq_kernel(x_ref, h0_ref, c0_ref, wx_ref, wh_ref, b_ref,
                    hy_ref, cy_ref, h_state, *, tn):
    # Grid = (batch tiles [parallel], time [arbitrary]).  Weights have a
    # constant index_map -> fetched once and resident across all T steps.
    # h is carried in a bf16 VMEM scratch; c is carried in the resident cy_ref
    # output block (constant index across the time axis).
    t = pl.program_id(1)

    @pl.when(t == 0)
    def _init():
        h_state[...] = h0_ref[...]
        cy_ref[...] = c0_ref[...]

    gates = jnp.dot(x_ref[...], wx_ref[...], preferred_element_type=jnp.float32)
    gates = gates + jnp.dot(h_state[...], wh_ref[...],
                            preferred_element_type=jnp.float32)
    gates = gates + b_ref[...]

    n_tiles = cy_ref.shape[1] // tn
    for j in range(n_tiles):          # static unroll over lane-aligned H tiles
        g0 = j * 4 * tn
        lo, hi = j * tn, (j + 1) * tn
        ingate     = _sigmoid(gates[:, g0 + 0 * tn: g0 + 1 * tn])
        forgetgate = _sigmoid(gates[:, g0 + 1 * tn: g0 + 2 * tn])
        cellgate   = jnp.tanh(gates[:, g0 + 2 * tn: g0 + 3 * tn])
        outgate    = _sigmoid(gates[:, g0 + 3 * tn: g0 + 4 * tn])

        cy = cy_ref[:, lo:hi] * forgetgate + ingate * cellgate
        hy = outgate * jnp.tanh(cy)
        cy_ref[:, lo:hi] = cy
        hy_ref[:, lo:hi] = hy.astype(hy_ref.dtype)
        h_state[:, lo:hi] = hy.astype(h_state.dtype)


# --------------------------------------------------------------------------
# One-time parameter packing (init-time, NOT on the per-step hot path)
# --------------------------------------------------------------------------
def prepare_lstm_params(w_x2h, b_x2h, w_h2h, b_h2h):
    """w_x2h: (4H, I), w_h2h: (4H, H), biases: (4H,) — PyTorch nn.Linear layout."""
    four_h, in_size = w_x2h.shape
    hidden = w_h2h.shape[1]
    assert four_h == 4 * hidden and w_h2h.shape[0] == 4 * hidden

    hidden_p = _round_up(hidden, 128)           # lane-tile aligned gate width
    k_dim = in_size + hidden_p
    tn = _choose_tile_n(hidden_p, k_dim, _vmem_limit_bytes())
    n_tiles = hidden_p // tn

    def pack_w(w, rows):                        # (4H, rows) -> (rows, 4*Hp)
        w4 = w.reshape(4, hidden, rows)         # gate-major [i,f,g,o]
        w4 = jnp.pad(w4, ((0, 0), (0, hidden_p - hidden), (0, 0)))
        w4 = w4.reshape(4, n_tiles, tn, rows)
        # columns laid out per H-tile as [i|f|g|o] blocks of tn
        return jnp.transpose(w4, (3, 1, 0, 2)).reshape(rows, 4 * hidden_p)

    wx = pack_w(w_x2h, in_size).astype(jnp.bfloat16)                 # (I,  4*Hp)
    wh = pack_w(w_h2h, hidden)                                       # (H,  4*Hp)
    wh = jnp.pad(wh, ((0, hidden_p - hidden), (0, 0))).astype(jnp.bfloat16)  # (Hp, 4*Hp)

    b = (b_x2h + b_h2h).reshape(4, hidden)
    b = jnp.pad(b, ((0, 0), (0, hidden_p - hidden)))
    b = b.reshape(4, n_tiles, tn)
    b = jnp.transpose(b, (1, 0, 2)).reshape(1, 4 * hidden_p).astype(jnp.float32)

    meta = dict(input_size=in_size, hidden_size=hidden,
                hidden_padded=hidden_p, tile_n=tn)
    return dict(wx=wx, wh=wh, b=b, meta=meta)


# --------------------------------------------------------------------------
# Single-step wrapper (matches the PyTorch module's forward)
# --------------------------------------------------------------------------
def lstm_cell_step(x, hx, cx, params):
    wx, wh, b, meta = params["wx"], params["wh"], params["b"], params["meta"]
    I, H = meta["input_size"], meta["hidden_size"]
    Hp, tn = meta["hidden_padded"], meta["tile_n"]
    B = x.shape[0]

    tm = _choose_tile_m(B)
    B_pad = _round_up(B, tm)

    xb = jnp.pad(x, ((0, B_pad - B), (0, 0))).astype(jnp.bfloat16)
    hb = jnp.pad(hx, ((0, B_pad - B), (0, Hp - H))).astype(jnp.bfloat16)
    cb = jnp.pad(cx.astype(jnp.float32), ((0, B_pad - B), (0, Hp - H)))

    # H-tiles outer (megacore shards distinct weight columns per core),
    # batch tiles inner (weight block index constant -> stays VMEM-resident).
    grid = (Hp // tn, B_pad // tm)

    cost = pl.CostEstimate(
        flops=2 * B_pad * (I + Hp) * 4 * Hp + 10 * B_pad * Hp,
        transcendentals=8 * B_pad * Hp,
        bytes_accessed=(wx.size + wh.size) * 2 + b.size * 4
        + B_pad * (I + Hp) * 2 + B_pad * Hp * 4 + B_pad * Hp * (2 + 4),
    )

    hy, cy = pl.pallas_call(
        lstm_step_kernel,
        out_shape=(
            jax.ShapeDtypeStruct((B_pad, Hp), jnp.bfloat16),
            jax.ShapeDtypeStruct((B_pad, Hp), jnp.float32),
        ),
        grid=grid,
        in_specs=[
            pl.BlockSpec((tm, I), lambda j, i: (i, 0)),       # x
            pl.BlockSpec((tm, Hp), lambda j, i: (i, 0)),      # h
            pl.BlockSpec((I, 4 * tn), lambda j, i: (0, j)),   # Wx (packed)
            pl.BlockSpec((Hp, 4 * tn), lambda j, i: (0, j)),  # Wh (packed)
            pl.BlockSpec((1, 4 * tn), lambda j, i: (0, j)),   # bias
            pl.BlockSpec((tm, tn), lambda j, i: (i, j)),      # cell state
        ],
        out_specs=(
            pl.BlockSpec((tm, tn), lambda j, i: (i, j)),      # hy (bf16)
            pl.BlockSpec((tm, tn), lambda j, i: (i, j)),      # cy (f32)
        ),
        compiler_params=pltpu.CompilerParams(
            dimension_semantics=("parallel", "parallel"),
            vmem_limit_bytes=_vmem_limit_bytes(),
        ),
        cost_estimate=cost,
    )(xb, hb, wx, wh, b, cb)

    return hy[:B, :H], cy[:B, :H]


# --------------------------------------------------------------------------
# Sequence wrapper: T steps, weights resident across time
# --------------------------------------------------------------------------
def lstm_sequence(x_seq, h0, c0, params):
    """x_seq: (T, B, I). Returns (hy_seq [T,B,H] bf16, (h_T bf16, c_T f32))."""
    wx, wh, b, meta = params["wx"], params["wh"], params["b"], params["meta"]
    I, H = meta["input_size"], meta["hidden_size"]
    Hp, tn = meta["hidden_padded"], meta["tile_n"]
    T, B, _ = x_seq.shape

    tm = _choose_tile_m(B)
    B_pad = _round_up(B, tm)

    # One-time (per sequence, not per step) pad + cast.
    xs = jnp.pad(x_seq, ((0, 0), (0, B_pad - B), (0, 0))).astype(jnp.bfloat16)
    hb = jnp.pad(h0, ((0, B_pad - B), (0, Hp - H))).astype(jnp.bfloat16)
    cb = jnp.pad(c0.astype(jnp.float32), ((0, B_pad - B), (0, Hp - H)))

    grid = (B_pad // tm, T)    # batch parallel (outer), time arbitrary (inner)

    cost = pl.CostEstimate(
        flops=T * (2 * B_pad * (I + Hp) * 4 * Hp + 10 * B_pad * Hp),
        transcendentals=T * 8 * B_pad * Hp,
        bytes_accessed=(wx.size + wh.size) * 2 + b.size * 4
        + T * B_pad * (I * 2 + Hp * 2) + B_pad * Hp * (2 + 4 + 4),
    )

    kernel = functools.partial(lstm_seq_kernel, tn=tn)

    hy_seq, cy = pl.pallas_call(
        kernel,
        out_shape=(
            jax.ShapeDtypeStruct((T, B_pad, Hp), jnp.bfloat16),
            jax.ShapeDtypeStruct((B_pad, Hp), jnp.float32),
        ),
        grid=grid,
        in_specs=[
            pl.BlockSpec((None, tm, I), lambda i, t: (t, i, 0)),   # x_t
            pl.BlockSpec((tm, Hp), lambda i, t: (i, 0)),           # h0 (resident)
            pl.BlockSpec((tm, Hp), lambda i, t: (i, 0)),           # c0 (resident)
            pl.BlockSpec((I, 4 * Hp), lambda i, t: (0, 0)),        # Wx (resident)
            pl.BlockSpec((Hp, 4 * Hp), lambda i, t: (0, 0)),       # Wh (resident)
            pl.BlockSpec((1, 4 * Hp), lambda i, t: (0, 0)),        # bias (resident)
        ],
        out_specs=(
            pl.BlockSpec((None, tm, Hp), lambda i, t: (t, i, 0)),  # hy_t (bf16)
            pl.BlockSpec((tm, Hp), lambda i, t: (i, 0)),           # c_T (resident)
        ),
        scratch_shapes=[pltpu.VMEM((tm, Hp), jnp.bfloat16)],       # recurrent h
        compiler_params=pltpu.CompilerParams(
            dimension_semantics=("parallel", "arbitrary"),
            vmem_limit_bytes=_vmem_limit_bytes(),
        ),
        cost_estimate=cost,
    )(xs, hb, cb, wx, wh, b)

    hy_seq = hy_seq[:, :B, :H]
    return hy_seq, (hy_seq[-1], cy[:B, :H])


# --------------------------------------------------------------------------
# Pure-JAX reference (matches the PyTorch module, f32 everywhere)
# --------------------------------------------------------------------------
def _reference_step(x, hx, cx, w_x2h, b_x2h, w_h2h, b_h2h):
    gates = x @ w_x2h.T + b_x2h + hx @ w_h2h.T + b_h2h
    i, f, g, o = jnp.split(gates, 4, axis=1)
    i = jax.nn.sigmoid(i)
    f = jax.nn.sigmoid(f)
    g = jnp.tanh(g)
    o = jax.nn.sigmoid(o)
    cy = cx * f + i * g
    hy = o * jnp.tanh(cy)
    return hy, cy


if __name__ == "__main__":
    B, I, H, T = 4, 16, 32, 8

    key = jax.random.PRNGKey(0)
    k_x, k_xs, k_h, k_c, k_wx, k_bx, k_wh, k_bh = jax.random.split(key, 8)

    # Matches reset_parameters(): U(-1/sqrt(H), 1/sqrt(H))
    std = 1.0 / math.sqrt(H)
    w_x2h = jax.random.uniform(k_wx, (4 * H, I), jnp.float32, -std, std)
    b_x2h = jax.random.uniform(k_bx, (4 * H,), jnp.float32, -std, std)
    w_h2h = jax.random.uniform(k_wh, (4 * H, H), jnp.float32, -std, std)
    b_h2h = jax.random.uniform(k_bh, (4 * H,), jnp.float32, -std, std)

    x = jax.random.normal(k_x, (B, I), jnp.float32)
    hx = jax.random.normal(k_h, (B, H), jnp.float32)
    cx = jax.random.normal(k_c, (B, H), jnp.float32)

    params = prepare_lstm_params(w_x2h, b_x2h, w_h2h, b_h2h)

    # ---- single step (the module's forward) ----
    hy, cy = lstm_cell_step(x, hx, cx, params)
    jax.block_until_ready((hy, cy))
    hy_ref, cy_ref = _reference_step(x, hx, cx, w_x2h, b_x2h, w_h2h, b_h2h)
    assert jnp.allclose(hy.astype(jnp.float32), hy_ref, atol=2e-2, rtol=2e-2), "hy mismatch"
    assert jnp.allclose(cy, cy_ref, atol=2e-2, rtol=2e-2), "cy mismatch"

    # ---- full sequence (weights resident across all T steps) ----
    x_seq = jax.random.normal(k_xs, (T, B, I), jnp.float32)
    hy_seq, (h_T, c_T) = lstm_sequence(x_seq, hx, cx, params)
    jax.block_until_ready((hy_seq, h_T, c_T))

    h_r, c_r = hx, cx
    hs_ref = []
    for t in range(T):
        h_r, c_r = _reference_step(x_seq[t], h_r, c_r, w_x2h, b_x2h, w_h2h, b_h2h)
        hs_ref.append(h_r)
    hy_seq_ref = jnp.stack(hs_ref, axis=0)

    assert jnp.allclose(hy_seq.astype(jnp.float32), hy_seq_ref,
                        atol=3e-2, rtol=3e-2), "hy_seq mismatch"
    assert jnp.allclose(c_T, c_r, atol=3e-2, rtol=3e-2), "c_T mismatch"

    print("KERNEL_OK")
</pallas_src>

<mosaic_0001>
module attributes {stable_mosaic.version = 11 : i64} {
  func.func @lstm_step_kernel(%arg0: i32, %arg1: i32, %arg2: memref<16x16xbf16, #tpu.memory_space<vmem>>, %arg3: memref<16x128xbf16, #tpu.memory_space<vmem>>, %arg4: memref<16x512xbf16, #tpu.memory_space<vmem>>, %arg5: memref<128x512xbf16, #tpu.memory_space<vmem>>, %arg6: memref<1x512xf32, #tpu.memory_space<vmem>>, %arg7: memref<16x128xf32, #tpu.memory_space<vmem>>, %arg8: memref<16x128xbf16, #tpu.memory_space<vmem>>, %arg9: memref<16x128xf32, #tpu.memory_space<vmem>>) attributes {dimension_semantics = [#tpu.dimension_semantics<parallel>, #tpu.dimension_semantics<parallel>], iteration_bounds = array<i64: 1, 1>, scalar_prefetch = 0 : i64, scratch_operands = 0 : i64, tpu.core_type = #tpu.core_type<tc>, window_params = [{transform_indices = @transform_0, window_bounds = array<i64: 16, 16>}, {transform_indices = @transform_1, window_bounds = array<i64: 16, 128>}, {transform_indices = @transform_2, window_bounds = array<i64: 16, 512>}, {transform_indices = @transform_3, window_bounds = array<i64: 128, 512>}, {transform_indices = @transform_4, window_bounds = array<i64: 1, 512>}, {transform_indices = @transform_5, window_bounds = array<i64: 16, 128>}, {transform_indices = @transform_6, window_bounds = array<i64: 16, 128>}, {transform_indices = @transform_7, window_bounds = array<i64: 16, 128>}]} {
    %c0 = arith.constant 0 : index
    %c0_0 = arith.constant 0 : index
    %0 = vector.load %arg2[%c0, %c0_0] : memref<16x16xbf16, #tpu.memory_space<vmem>>, vector<16x16xbf16>
    %c0_1 = arith.constant 0 : index
    %c0_2 = arith.constant 0 : index
    %1 = vector.load %arg4[%c0_1, %c0_2] : memref<16x512xbf16, #tpu.memory_space<vmem>>, vector<16x512xbf16>
    %cst = arith.constant dense<0.000000e+00> : vector<16x512xf32>
    %2 = tpu.matmul %0, %1, %cst {dimension_numbers = #tpu.dot_dimension_numbers<[1], [0], [0], [1], [0, 0, 1, 1], [], []>} : vector<16x16xbf16>, vector<16x512xbf16>, vector<16x512xf32> -> vector<16x512xf32>
    %c0_3 = arith.constant 0 : index
    %c0_4 = arith.constant 0 : index
    %3 = vector.load %arg3[%c0_3, %c0_4] : memref<16x128xbf16, #tpu.memory_space<vmem>>, vector<16x128xbf16>
    %c0_5 = arith.constant 0 : index
    %c0_6 = arith.constant 0 : index
    %4 = vector.load %arg5[%c0_5, %c0_6] : memref<128x512xbf16, #tpu.memory_space<vmem>>, vector<128x512xbf16>
    %cst_7 = arith.constant dense<0.000000e+00> : vector<16x512xf32>
    %5 = tpu.matmul %3, %4, %cst_7 {dimension_numbers = #tpu.dot_dimension_numbers<[1], [0], [0], [1], [0, 0, 1, 1], [], []>} : vector<16x128xbf16>, vector<128x512xbf16>, vector<16x512xf32> -> vector<16x512xf32>
    %6 = arith.addf %2, %5 : vector<16x512xf32>
    %c0_8 = arith.constant 0 : index
    %c0_9 = arith.constant 0 : index
    %7 = vector.load %arg6[%c0_8, %c0_9] : memref<1x512xf32, #tpu.memory_space<vmem>>, vector<1x512xf32>
    %8 = vector.broadcast %7 : vector<1x512xf32> to vector<16x512xf32>
    %9 = arith.addf %6, %8 : vector<16x512xf32>
    %10 = vector.extract_strided_slice %9 {offsets = [0, 0], sizes = [16, 128], strides = [1, 1]} : vector<16x512xf32> to vector<16x128xf32>
    %cst_10 = arith.constant 0.000000e+00 : f32
    %11 = vector.broadcast %cst_10 : f32 to vector<16x128xf32>
    %12 = arith.subf %11, %10 : vector<16x128xf32>
    %13 = math.exp %12 : vector<16x128xf32>
    %cst_11 = arith.constant 1.000000e+00 : f32
    %14 = vector.broadcast %cst_11 : f32 to vector<16x128xf32>
    %15 = arith.addf %14, %13 : vector<16x128xf32>
    %16 = tpu.reciprocal %15 {approx = true} : vector<16x128xf32> -> vector<16x128xf32>
    %17 = vector.extract_strided_slice %9 {offsets = [0, 128], sizes = [16, 128], strides = [1, 1]} : vector<16x512xf32> to vector<16x128xf32>
    %cst_12 = arith.constant 0.000000e+00 : f32
    %18 = vector.broadcast %cst_12 : f32 to vector<16x128xf32>
    %19 = arith.subf %18, %17 : vector<16x128xf32>
    %20 = math.exp %19 : vector<16x128xf32>
    %cst_13 = arith.constant 1.000000e+00 : f32
    %21 = vector.broadcast %cst_13 : f32 to vector<16x128xf32>
    %22 = arith.addf %21, %20 : vector<16x128xf32>
    %23 = tpu.reciprocal %22 {approx = true} : vector<16x128xf32> -> vector<16x128xf32>
    %24 = vector.extract_strided_slice %9 {offsets = [0, 256], sizes = [16, 128], strides = [1, 1]} : vector<16x512xf32> to vector<16x128xf32>
    %25 = math.tanh %24 : vector<16x128xf32>
    %26 = vector.extract_strided_slice %9 {offsets = [0, 384], sizes = [16, 128], strides = [1, 1]} : vector<16x512xf32> to vector<16x128xf32>
    %cst_14 = arith.constant 0.000000e+00 : f32
    %27 = vector.broadcast %cst_14 : f32 to vector<16x128xf32>
    %28 = arith.subf %27, %26 : vector<16x128xf32>
    %29 = math.exp %28 : vector<16x128xf32>
    %cst_15 = arith.constant 1.000000e+00 : f32
    %30 = vector.broadcast %cst_15 : f32 to vector<16x128xf32>
    %31 = arith.addf %30, %29 : vector<16x128xf32>
    %32 = tpu.reciprocal %31 {approx = true} : vector<16x128xf32> -> vector<16x128xf32>
    %c0_16 = arith.constant 0 : index
    %c0_17 = arith.constant 0 : index
    %33 = vector.load %arg7[%c0_16, %c0_17] : memref<16x128xf32, #tpu.memory_space<vmem>>, vector<16x128xf32>
    %34 = arith.mulf %33, %23 : vector<16x128xf32>
    %35 = arith.mulf %16, %25 : vector<16x128xf32>
    %36 = arith.addf %34, %35 : vector<16x128xf32>
    %37 = math.tanh %36 : vector<16x128xf32>
    %38 = arith.mulf %32, %37 : vector<16x128xf32>
    %39 = arith.truncf %38 : vector<16x128xf32> to vector<16x128xbf16>
    %c0_18 = arith.constant 0 : index
    %c0_19 = arith.constant 0 : index
    %40 = vector.load %arg8[%c0_18, %c0_19] : memref<16x128xbf16, #tpu.memory_space<vmem>>, vector<16x128xbf16>
    tpu.vector_store %arg8[%c0_18, %c0_19], %39 {strides = array<i32>} : memref<16x128xbf16, #tpu.memory_space<vmem>>, vector<16x128xbf16>,
    %c0_20 = arith.constant 0 : index
    %c0_21 = arith.constant 0 : index
    %41 = vector.load %arg9[%c0_20, %c0_21] : memref<16x128xf32, #tpu.memory_space<vmem>>, vector<16x128xf32>
    tpu.vector_store %arg9[%c0_20, %c0_21], %36 {strides = array<i32>} : memref<16x128xf32, #tpu.memory_space<vmem>>, vector<16x128xf32>,
    return
  }
  func.func @transform_0(%arg0: i32, %arg1: i32) -> (i32, i32) {
    %c0_i32 = arith.constant 0 : i32
    %c0_i32_0 = arith.constant 0 : i32
    return %arg1, %c0_i32 : i32, i32
  }
  func.func @transform_1(%arg0: i32, %arg1: i32) -> (i32, i32) {
    %c0_i32 = arith.constant 0 : i32
    %c0_i32_0 = arith.constant 0 : i32
    return %arg1, %c0_i32 : i32, i32
  }
  func.func @transform_2(%arg0: i32, %arg1: i32) -> (i32, i32) {
    %c0_i32 = arith.constant 0 : i32
    %c0_i32_0 = arith.constant 0 : i32
    return %c0_i32, %arg0 : i32, i32
  }
  func.func @transform_3(%arg0: i32, %arg1: i32) -> (i32, i32) {
    %c0_i32 = arith.constant 0 : i32
    %c0_i32_0 = arith.constant 0 : i32
    return %c0_i32, %arg0 : i32, i32
  }
  func.func @transform_4(%arg0: i32, %arg1: i32) -> (i32, i32) {
    %c0_i32 = arith.constant 0 : i32
    %c0_i32_0 = arith.constant 0 : i32
    return %c0_i32, %arg0 : i32, i32
  }
  func.func @transform_5(%arg0: i32, %arg1: i32) -> (i32, i32) {
    %c0_i32 = arith.constant 0 : i32
    return %arg1, %arg0 : i32, i32
  }
  func.func @transform_6(%arg0: i32, %arg1: i32) -> (i32, i32) {
    %c0_i32 = arith.constant 0 : i32
    return %arg1, %arg0 : i32, i32
  }
  func.func @transform_7(%arg0: i32, %arg1: i32) -> (i32, i32) {
    %c0_i32 = arith.constant 0 : i32
    return %arg1, %arg0 : i32, i32
  }
}

</mosaic_0001>

<llo_original>
// kernel: tpu_custom_call.1
$region0: #{tpu_custom_call.1}
  #allocation0 [shape = 'u32[]', space=smem, size = 0x4, offset = 0x4, fixed_abs, tag = 'smem constant byte address 0x4 - core index']
  #allocation1 [shape = 'u32[144,128]{1,0:T(1,128)}', space=vmem, size = 0x12000, scoped, tag = 'internal scratch']
  %s0 = inlined_call_operand.hbm [shape: bf16[16,16], index: 0, kind: input, shape index: {}]
  %s1 = inlined_call_operand.hbm [shape: bf16[16,128], index: 1, kind: input, shape index: {}]
  %s2 = inlined_call_operand.hbm [shape: bf16[16,512], index: 2, kind: input, shape index: {}]
  %s3 = inlined_call_operand.hbm [shape: bf16[128,512], index: 3, kind: input, shape index: {}]
  %s4 = inlined_call_operand.hbm [shape: f32[1,512], index: 4, kind: input, shape index: {}]
  %s5 = inlined_call_operand.vmem [shape: f32[16,128], index: 5, kind: input, shape index: {}]
  %s6 = inlined_call_operand.hbm [shape: bf16[16,128], index: 6, kind: output, shape index: {0}]
  %s7 = inlined_call_operand.hbm [shape: f32[16,128], index: 7, kind: output, shape index: {1}]
  %8 = xla_tuple %s6, %s7
  %s9 = sld [smem:[#allocation0]]
  $region62: #{tpu_custom_call.1} parent=0
    _
  %s11 = ssub.s32 1, %s9
  %s12 = scalar_select 0, %s11, %s9
  $region1: #{tpu_custom_call.1} parent=0
    #allocation2 [shape = 'u8[4096]{0}', space=vmem, size = 0x1000, scoped, tag = 'input window, operand 0, single buffered']
    #allocation3 [shape = 's32[1]{0}', space=sflag, size = 0x4, scoped, tag = 'scoped memory for tpu_custom_call.1']
    #allocation4 [shape = 's32[1]{0}', space=sflag, size = 0x4, scoped, tag = 'scoped memory for tpu_custom_call.1']
    #allocation5 [shape = 'u8[4096]{0}', space=vmem, size = 0x1000, scoped, tag = 'input window, operand 1, single buffered']
    #allocation6 [shape = 's32[1]{0}', space=sflag, size = 0x4, scoped, tag = 'scoped memory for tpu_custom_call.1']
    #allocation7 [shape = 'u8[16384]{0}', space=vmem, size = 0x4000, scoped, tag = 'input window, operand 2, single buffered']
    #allocation8 [shape = 'u8[131072]{0}', space=vmem, size = 0x20000, scoped, tag = 'input window, operand 3, single buffered']
    #allocation9 [shape = 's32[1]{0}', space=sflag, size = 0x4, scoped, tag = 'scoped memory for tpu_custom_call.1']
    #allocation10 [shape = 'u8[2048]{0}', space=vmem, size = 0x800, scoped, tag = 'input window, operand 4, single buffered']
    #allocation11 [shape = 'u8[4096]{0}', space=vmem, size = 0x1000, scoped, tag = 'output window, operand 0, single buffered']
    #allocation12 [shape = 'u8[8192]{0}', space=vmem, size = 0x2000, scoped, tag = 'output window, operand 1, single buffered']
    #allocation13 [shape = 's32[1]{0}', space=sflag, size = 0x4, scoped, tag = 'scoped memory for tpu_custom_call.1']
    %13 = vsyncpa [#allocation3], 0
    %14 = vsyncpa [#allocation6], 0
    %15 = vsyncpa [#allocation9], 0
    %16 = vsyncpa [#allocation4], 0
    %17 = vsyncpa [#allocation13], 0
    // Predicated region
    $region2: #{tpu_custom_call.1} parent=1 // pred_check
      _
    $region3: #{tpu_custom_call.1} parent=1 // pred_check_branch
      %19 = sbr.rel (0) target = $region5
    $region4: #{tpu_custom_call.1} parent=1 // pred_region
      %s21 = ssub.s32 128, 128
      %22 = vsyncadd [#allocation3], %s21
      %s23 = sshll.u32 [#allocation2], 4
      %s24 = int_to_ptr.vmem [resolvable:$true] %s23
      %29 = dma.hbm_to_vmem [thread:$0]  %s0, 128, %s24, [#allocation3], 64, 64, 4
    $region5: #{tpu_custom_call.1} parent=1 // pred_fallthru
      _
    // Predicated region
    $region6: #{tpu_custom_call.1} parent=1 // pred_check
      _
    $region7: #{tpu_custom_call.1} parent=1 // pred_check_branch
      %31 = sbr.rel (0) target = $region9
    $region8: #{tpu_custom_call.1} parent=1 // pred_region
      %s33 = ssub.s32 128, 128
      %34 = vsyncadd [#allocation6], %s33
      %s35 = sshll.u32 [#allocation5], 4
      %s36 = int_to_ptr.vmem [resolvable:$true] %s35
      %41 = dma.hbm_to_vmem [thread:$0]  %s1, 128, %s36, [#allocation6], 64, 64, 4
    $region9: #{tpu_custom_call.1} parent=1 // pred_fallthru
      _
    // Predicated region
    $region10: #{tpu_custom_call.1} parent=1 // pred_check
      _
    $region11: #{tpu_custom_call.1} parent=1 // pred_check_branch
      %43 = sbr.rel (0) target = $region13
    $region12: #{tpu_custom_call.1} parent=1 // pred_region
      %s45 = ssub.s32 512, 512
      %46 = vsyncadd [#allocation6], %s45
      %s47 = sshll.u32 [#allocation7], 4
      %s48 = int_to_ptr.vmem [resolvable:$true] %s47
      %53 = dma.hbm_to_vmem [thread:$0]  %s2, 512, %s48, [#allocation6], 256, 256, 16
    $region13: #{tpu_custom_call.1} parent=1 // pred_fallthru
      _
    // Predicated region
    $region14: #{tpu_custom_call.1} parent=1 // pred_check
      _
    $region15: #{tpu_custom_call.1} parent=1 // pred_check_branch
      %55 = sbr.rel (0) target = $region17
    $region16: #{tpu_custom_call.1} parent=1 // pred_region
      %s57 = ssub.s32 4096, 4096
      %58 = vsyncadd [#allocation9], %s57
      %s59 = sshll.u32 [#allocation8], 4
      %s60 = int_to_ptr.vmem [resolvable:$true] %s59
      %65 = dma.hbm_to_vmem [thread:$0]  %s3, 4096, %s60, [#allocation9], 256, 256, 16
    $region17: #{tpu_custom_call.1} parent=1 // pred_fallthru
      _
    // Predicated region
    $region18: #{tpu_custom_call.1} parent=1 // pred_check
      _
    $region19: #{tpu_custom_call.1} parent=1 // pred_check_branch
      %67 = sbr.rel (0) target = $region21
    $region20: #{tpu_custom_call.1} parent=1 // pred_region
      %s69 = ssub.s32 64, 64
      %70 = vsyncadd [#allocation9], %s69
      %s72 = sshll.u32 [#allocation10], 4
      %s73 = int_to_ptr.vmem [resolvable:$true] %s72
      %75 = dma.hbm_to_vmem [thread:$0]  %s4, 64, %s73, [#allocation9]
    $region21: #{tpu_custom_call.1} parent=1 // pred_fallthru
      _
    // Predicated region
    $region22: #{tpu_custom_call.1} parent=1 // pred_check
      _
    $region23: #{tpu_custom_call.1} parent=1 // pred_check_branch
      %77 = sbr.rel (0) target = $region25
    $region24: #{tpu_custom_call.1} parent=1 // pred_region
      _
    $region25: #{tpu_custom_call.1} parent=1 // pred_fallthru
      _
    // Predicated region
    $region26: #{tpu_custom_call.1} parent=1 // pred_check
      _
    $region27: #{tpu_custom_call.1} parent=1 // pred_check_branch
      %79 = sbr.rel (0) target = $region29
    $region28: #{tpu_custom_call.1} parent=1 // pred_region
      %80 = dma.done [#allocation3], 128
    $region29: #{tpu_custom_call.1} parent=1 // pred_fallthru
      _
    // Predicated region
    $region30: #{tpu_custom_call.1} parent=1 // pred_check
      _
    $region31: #{tpu_custom_call.1} parent=1 // pred_check_branch
      %82 = sbr.rel (0) target = $region33
    $region32: #{tpu_custom_call.1} parent=1 // pred_region
      %83 = dma.done [#allocation6], 128
    $region33: #{tpu_custom_call.1} parent=1 // pred_fallthru
      _
    // Predicated region
    $region34: #{tpu_custom_call.1} parent=1 // pred_check
      _
    $region35: #{tpu_custom_call.1} parent=1 // pred_check_branch
      %85 = sbr.rel (0) target = $region37
    $region36: #{tpu_custom_call.1} parent=1 // pred_region
      %86 = dma.done [#allocation6], 512
    $region37: #{tpu_custom_call.1} parent=1 // pred_fallthru
      _
    // Predicated region
    $region38: #{tpu_custom_call.1} parent=1 // pred_check
      _
    $region39: #{tpu_custom_call.1} parent=1 // pred_check_branch
      %88 = sbr.rel (0) target = $region41
    $region40: #{tpu_custom_call.1} parent=1 // pred_region
      %89 = dma.done [#allocation9], 4096
    $region41: #{tpu_custom_call.1} parent=1 // pred_fallthru
      _
    // Predicated region
    $region42: #{tpu_custom_call.1} parent=1 // pred_check
      _
    $region43: #{tpu_custom_call.1} parent=1 // pred_check_branch
      %91 = sbr.rel (0) target = $region45
    $region44: #{tpu_custom_call.1} parent=1 // pred_region
      %92 = dma.done [#allocation9], 64
    $region45: #{tpu_custom_call.1} parent=1 // pred_fallthru
      _
    %v94 = vld [vmem:[#allocation2] sm:$0xf]
    %v95 = vld [vmem:[#allocation2 + $0x4] sm:$0xf]
    %v96 = vld [vmem:[#allocation7] sm:$0xff]
    %v97 = vld [vmem:[#allocation7 + $0x8] sm:$0xff]
    %v98 = vld [vmem:[#allocation7 + $0x10] sm:$0xff]
    %v99 = vld [vmem:[#allocation7 + $0x18] sm:$0xff]
    %v100 = vld [vmem:[#allocation5] sm:$0xf]
    %v101 = vld [vmem:[#allocation5 + $0x4] sm:$0xf]
    %v102 = vld [vmem:[#allocation8] sm:$0xff]
    %v103 = vld [vmem:[#allocation8 + $0x8] sm:$0xff]
    %v104 = vld [vmem:[#allocation8 + $0x10] sm:$0xff]
    %v105 = vld [vmem:[#allocation8 + $0x18] sm:$0xff]
    %v106 = vld [vmem:[#allocation8 + $0x20] sm:$0xff]
    %v107 = vld [vmem:[#allocation8 + $0x28] sm:$0xff]
    %v108 = vld [vmem:[#allocation8 + $0x30] sm:$0xff]
    %v109 = vld [vmem:[#allocation8 + $0x38] sm:$0xff]
    %v110 = vld [vmem:[#allocation8 + $0x40] sm:$0xff]
    %v111 = vld [vmem:[#allocation8 + $0x48] sm:$0xff]
    %v112 = vld [vmem:[#allocation8 + $0x50] sm:$0xff]
    %v113 = vld [vmem:[#allocation8 + $0x58] sm:$0xff]
    %v114 = vld [vmem:[#allocation8 + $0x60] sm:$0xff]
    %v115 = vld [vmem:[#allocation8 + $0x68] sm:$0xff]
    %v116 = vld [vmem:[#allocation8 + $0x70] sm:$0xff]
    %v117 = vld [vmem:[#allocation8 + $0x78] sm:$0xff]
    %v118 = vld [vmem:[#allocation8 + $0x80] sm:$0xff]
    %v119 = vld [vmem:[#allocation8 + $0x88] sm:$0xff]
    %v120 = vld [vmem:[#allocation8 + $0x90] sm:$0xff]
    %v121 = vld [vmem:[#allocation8 + $0x98] sm:$0xff]
    %v122 = vld [vmem:[#allocation8 + $0xa0] sm:$0xff]
    %v123 = vld [vmem:[#allocation8 + $0xa8] sm:$0xff]
    %v124 = vld [vmem:[#allocation8 + $0xb0] sm:$0xff]
    %v125 = vld [vmem:[#allocation8 + $0xb8] sm:$0xff]
    %v126 = vld [vmem:[#allocation8 + $0xc0] sm:$0xff]
    %v127 = vld [vmem:[#allocation8 + $0xc8] sm:$0xff]
    %v128 = vld [vmem:[#allocation8 + $0xd0] sm:$0xff]
    %v129 = vld [vmem:[#allocation8 + $0xd8] sm:$0xff]
    %v130 = vld [vmem:[#allocation8 + $0xe0] sm:$0xff]
    %v131 = vld [vmem:[#allocation8 + $0xe8] sm:$0xff]
    %v132 = vld [vmem:[#allocation8 + $0xf0] sm:$0xff]
    %v133 = vld [vmem:[#allocation8 + $0xf8] sm:$0xff]
    %v136 = vunpack.c.l.b16 %v100
    %v137 = vunpack.c.l.b16 %v101
    %v138 = vpack.c.b16 %v137, %v136
    %v172 = vunpack.c.l.b16 %v102
    %v173 = vunpack.c.h.b16 %v102
    %v174 = vunpack.c.l.b16 %v103
    %v175 = vunpack.c.h.b16 %v103
    %v176 = vunpack.c.l.b16 %v104
    %v177 = vunpack.c.h.b16 %v104
    %v178 = vunpack.c.l.b16 %v105
    %v179 = vunpack.c.h.b16 %v105
    %v180 = vunpack.c.l.b16 %v106
    %v181 = vunpack.c.h.b16 %v106
    %v182 = vunpack.c.l.b16 %v107
    %v183 = vunpack.c.h.b16 %v107
    %v184 = vunpack.c.l.b16 %v108
    %v185 = vunpack.c.h.b16 %v108
    %v186 = vunpack.c.l.b16 %v109
    %v187 = vunpack.c.h.b16 %v109
    %v188 = vunpack.c.l.b16 %v110
    %v189 = vunpack.c.h.b16 %v110
    %v190 = vunpack.c.l.b16 %v111
    %v191 = vunpack.c.h.b16 %v111
    %v192 = vunpack.c.l.b16 %v112
    %v193 = vunpack.c.h.b16 %v112
    %v194 = vunpack.c.l.b16 %v113
    %v195 = vunpack.c.h.b16 %v113
    %v196 = vunpack.c.l.b16 %v114
    %v197 = vunpack.c.h.b16 %v114
    %v198 = vunpack.c.l.b16 %v115
    %v199 = vunpack.c.h.b16 %v115
    %v200 = vunpack.c.l.b16 %v116
    %v201 = vunpack.c.h.b16 %v116
    %v202 = vunpack.c.l.b16 %v117
    %v203 = vunpack.c.h.b16 %v117
    %v204 = vunpack.c.l.b16 %v118
    %v205 = vunpack.c.h.b16 %v118
    %v206 = vunpack.c.l.b16 %v119
    %v207 = vunpack.c.h.b16 %v119
    %v208 = vunpack.c.l.b16 %v120
    %v209 = vunpack.c.h.b16 %v120
    %v210 = vunpack.c.l.b16 %v121
    %v211 = vunpack.c.h.b16 %v121
    %v212 = vunpack.c.l.b16 %v122
    %v213 = vunpack.c.h.b16 %v122
    %v214 = vunpack.c.l.b16 %v123
    %v215 = vunpack.c.h.b16 %v123
    %v216 = vunpack.c.l.b16 %v124
    %v217 = vunpack.c.h.b16 %v124
    %v218 = vunpack.c.l.b16 %v125
    %v219 = vunpack.c.h.b16 %v125
    %v220 = vunpack.c.l.b16 %v126
    %v221 = vunpack.c.h.b16 %v126
    %v222 = vunpack.c.l.b16 %v127
    %v223 = vunpack.c.h.b16 %v127
    %v224 = vunpack.c.l.b16 %v128
    %v225 = vunpack.c.h.b16 %v128
    %v226 = vunpack.c.l.b16 %v129
    %v227 = vunpack.c.h.b16 %v129
    %v228 = vunpack.c.l.b16 %v130
    %v229 = vunpack.c.h.b16 %v130
    %v230 = vunpack.c.l.b16 %v131
    %v231 = vunpack.c.h.b16 %v131
    %v232 = vunpack.c.l.b16 %v132
    %v233 = vunpack.c.h.b16 %v132
    %v234 = vunpack.c.l.b16 %v133
    %v235 = vunpack.c.h.b16 %v133
    %v236 = vpack.c.b16 %v176, %v172
    %v237 = vpack.c.b16 %v177, %v173
    %v238 = vpack.c.b16 %v178, %v174
    %v239 = vpack.c.b16 %v179, %v175
    %v240 = vpack.c.b16 %v184, %v180
    %v241 = vpack.c.b16 %v185, %v181
    %v242 = vpack.c.b16 %v186, %v182
    %v243 = vpack.c.b16 %v187, %v183
    %v244 = vpack.c.b16 %v192, %v188
    %v245 = vpack.c.b16 %v193, %v189
    %v246 = vpack.c.b16 %v194, %v190
    %v247 = vpack.c.b16 %v195, %v191
    %v248 = vpack.c.b16 %v200, %v196
    %v249 = vpack.c.b16 %v201, %v197
    %v250 = vpack.c.b16 %v202, %v198
    %v251 = vpack.c.b16 %v203, %v199
    %v252 = vpack.c.b16 %v208, %v204
    %v253 = vpack.c.b16 %v209, %v205
    %v254 = vpack.c.b16 %v210, %v206
    %v255 = vpack.c.b16 %v211, %v207
    %v256 = vpack.c.b16 %v216, %v212
    %v257 = vpack.c.b16 %v217, %v213
    %v258 = vpack.c.b16 %v218, %v214
    %v259 = vpack.c.b16 %v219, %v215
    %v260 = vpack.c.b16 %v224, %v220
    %v261 = vpack.c.b16 %v225, %v221
    %v262 = vpack.c.b16 %v226, %v222
    %v263 = vpack.c.b16 %v227, %v223
    %v264 = vpack.c.b16 %v232, %v228
    %v265 = vpack.c.b16 %v233, %v229
    %v266 = vpack.c.b16 %v234, %v230
    %v267 = vpack.c.b16 %v235, %v231
    %300 = vmatprep.subr.bf16.mxu0 %v237
    %301 = vmatpush1.bf16.msra.mxu0 %v236
    %302 = vmatprep.subr.bf16.mxu0 %v241
    %303 = vmatpush1.bf16.msra.mxu0 %v240
    %304 = vmatprep.subr.bf16.mxu0 %v245
    %305 = vmatpush1.bf16.msra.mxu0 %v244
    %306 = vmatprep.subr.bf16.mxu0 %v249
    %307 = vmatpush1.bf16.msra.mxu0 %v248
    %308 = vmatprep.subr.bf16.mxu0 %v253
    %309 = vmatpush1.bf16.msra.mxu0 %v252
    %310 = vmatprep.subr.bf16.mxu0 %v257
    %311 = vmatpush1.bf16.msra.mxu0 %v256
    %312 = vmatprep.subr.bf16.mxu0 %v261
    %313 = vmatpush1.bf16.msra.mxu0 %v260
    %314 = vmatprep.subr.bf16.mxu0 %v265
    %315 = vmatpush1.bf16.msra.mxu0 %v264
    %316 = vmatprep.subr.bf16.mxu0 0
    %317 = vmatpush1.bf16.msra.mxu0 0
    %318 = vmatprep.subr.bf16.mxu0 0
    %319 = vmatpush1.bf16.msra.mxu0 0
    %320 = vmatprep.subr.bf16.mxu0 0
    %321 = vmatpush1.bf16.msra.mxu0 0
    %322 = vmatprep.subr.bf16.mxu0 0
    %323 = vmatpush1.bf16.msra.mxu0 0
    %324 = vmatprep.subr.bf16.mxu0 0
    %325 = vmatpush1.bf16.msra.mxu0 0
    %326 = vmatprep.subr.bf16.mxu0 0
    %327 = vmatpush1.bf16.msra.mxu0 0
    %328 = vmatprep.subr.bf16.mxu0 0
    %329 = vmatpush1.bf16.msra.mxu0 0
    %330 = vmatprep.subr.bf16.mxu0 0
    %331 = vmatpush1.bf16.msra.mxu0 0
    %332 = vmatprep.mubr.bf16.mxu0 0
    %333 = vmatmul.mubr.bf16.gmra.mrb[0].mxu0 %v138
    %v334 = vpop.f32.mrb[0].mxu0
    %v335 = vadd.f32 0.0, %v334
    %v336 = vpop.f32.mrb[0].mxu0
    %v337 = vadd.f32 0.0, %v336
    %v338 = vpop.f32.mrb[0].mxu0
    %v339 = vadd.f32 0.0, %v338
    %v340 = vpop.f32.mrb[0].mxu0
    %v341 = vadd.f32 0.0, %v340
    %342 = vdwg.mxu0
    %343 = vmatprep.subr.bf16.mxu0 %v239
    %344 = vmatpush1.bf16.msra.mxu0 %v238
    %345 = vmatprep.subr.bf16.mxu0 %v243
    %346 = vmatpush1.bf16.msra.mxu0 %v242
    %347 = vmatprep.subr.bf16.mxu0 %v247
    %348 = vmatpush1.bf16.msra.mxu0 %v246
    %349 = vmatprep.subr.bf16.mxu0 %v251
    %350 = vmatpush1.bf16.msra.mxu0 %v250
    %351 = vmatprep.subr.bf16.mxu0 %v255
    %352 = vmatpush1.bf16.msra.mxu0 %v254
    %353 = vmatprep.subr.bf16.mxu0 %v259
    %354 = vmatpush1.bf16.msra.mxu0 %v258
    %355 = vmatprep.subr.bf16.mxu0 %v263
    %356 = vmatpush1.bf16.msra.mxu0 %v262
    %357 = vmatprep.subr.bf16.mxu0 %v267
    %358 = vmatpush1.bf16.msra.mxu0 %v266
    %359 = vmatprep.subr.bf16.mxu0 0
    %360 = vmatpush1.bf16.msra.mxu0 0
    %361 = vmatprep.subr.bf16.mxu0 0
    %362 = vmatpush1.bf16.msra.mxu0 0
    %363 = vmatprep.subr.bf16.mxu0 0
    %364 = vmatpush1.bf16.msra.mxu0 0
    %365 = vmatprep.subr.bf16.mxu0 0
    %366 = vmatpush1.bf16.msra.mxu0 0
    %367 = vmatprep.subr.bf16.mxu0 0
    %368 = vmatpush1.bf16.msra.mxu0 0
    %369 = vmatprep.subr.bf16.mxu0 0
    %370 = vmatpush1.bf16.msra.mxu0 0
    %371 = vmatprep.subr.bf16.mxu0 0
    %372 = vmatpush1.bf16.msra.mxu0 0
    %373 = vmatprep.subr.bf16.mxu0 0
    %374 = vmatpush1.bf16.msra.mxu0 0
    %375 = vmatprep.mubr.bf16.mxu0 0
    %376 = vmatmul.mubr.bf16.gmra.mrb[0].mxu0 %v138
    %v377 = vpop.f32.mrb[0].mxu0
    %v378 = vadd.f32 0.0, %v377
    %v379 = vpop.f32.mrb[0].mxu0
    %v380 = vadd.f32 0.0, %v379
    %v381 = vpop.f32.mrb[0].mxu0
    %v382 = vadd.f32 0.0, %v381
    %v383 = vpop.f32.mrb[0].mxu0
    %v384 = vadd.f32 0.0, %v383
    %385 = vdwg.mxu0
    %v388 = vunpack.c.l.b16 %v94
    %v389 = vunpack.c.l.b16 %v95
    %v390 = vpack.c.b16 %v389, %v388
    %v395 = vunpack.c.l.b16 %v96
    %v396 = vunpack.c.h.b16 %v96
    %v397 = vunpack.c.l.b16 %v97
    %v398 = vunpack.c.h.b16 %v97
    %v399 = vunpack.c.l.b16 %v98
    %v400 = vunpack.c.h.b16 %v98
    %v401 = vunpack.c.l.b16 %v99
    %v402 = vunpack.c.h.b16 %v99
    %v403 = vpack.c.b16 %v399, %v395
    %v404 = vpack.c.b16 %v400, %v396
    %v405 = vpack.c.b16 %v401, %v397
    %v406 = vpack.c.b16 %v402, %v398
    %vm411 = vcmask 130048
    %v413 = vsel %vm411, %v390, 0
    %415 = vmatprep.subr.bf16.mxu0 %v404
    %416 = vmatpush1.bf16.msra.mxu0 %v403
    %417 = vmatprep.subr.bf16.mxu0 0
    %418 = vmatpush1.bf16.msra.mxu0 0
    %419 = vmatprep.subr.bf16.mxu0 0
    %420 = vmatpush1.bf16.msra.mxu0 0
    %421 = vmatprep.subr.bf16.mxu0 0
    %422 = vmatpush1.bf16.msra.mxu0 0
    %423 = vmatprep.subr.bf16.mxu0 0
    %424 = vmatpush1.bf16.msra.mxu0 0
    %425 = vmatprep.subr.bf16.mxu0 0
    %426 = vmatpush1.bf16.msra.mxu0 0
    %427 = vmatprep.subr.bf16.mxu0 0
    %428 = vmatpush1.bf16.msra.mxu0 0
    %429 = vmatprep.subr.bf16.mxu0 0
    %430 = vmatpush1.bf16.msra.mxu0 0
    %431 = vmatprep.subr.bf16.mxu0 0
    %432 = vmatpush1.bf16.msra.mxu0 0
    %433 = vmatprep.subr.bf16.mxu0 0
    %434 = vmatpush1.bf16.msra.mxu0 0
    %435 = vmatprep.subr.bf16.mxu0 0
    %436 = vmatpush1.bf16.msra.mxu0 0
    %437 = vmatprep.subr.bf16.mxu0 0
    %438 = vmatpush1.bf16.msra.mxu0 0
    %439 = vmatprep.subr.bf16.mxu0 0
    %440 = vmatpush1.bf16.msra.mxu0 0
    %441 = vmatprep.subr.bf16.mxu0 0
    %442 = vmatpush1.bf16.msra.mxu0 0
    %443 = vmatprep.subr.bf16.mxu0 0
    %444 = vmatpush1.bf16.msra.mxu0 0
    %445 = vmatprep.subr.bf16.mxu0 0
    %446 = vmatpush1.bf16.msra.mxu0 0
    %447 = vmatprep.mubr.bf16.mxu0 0
    %448 = vmatmul.mubr.bf16.gmra.mrb[0].mxu0 %v413
    %v449 = vpop.f32.mrb[0].mxu0
    %v450 = vadd.f32 %v335, %v449
    %v451 = vpop.f32.mrb[0].mxu0
    %v452 = vadd.f32 %v337, %v451
    %v453 = vpop.f32.mrb[0].mxu0
    %v454 = vadd.f32 %v339, %v453
    %v455 = vpop.f32.mrb[0].mxu0
    %v456 = vadd.f32 %v341, %v455
    %457 = vdwg.mxu0
    %458 = vmatprep.subr.bf16.mxu0 %v406
    %459 = vmatpush1.bf16.msra.mxu0 %v405
    %460 = vmatprep.subr.bf16.mxu0 0
    %461 = vmatpush1.bf16.msra.mxu0 0
    %462 = vmatprep.subr.bf16.mxu0 0
    %463 = vmatpush1.bf16.msra.mxu0 0
    %464 = vmatprep.subr.bf16.mxu0 0
    %465 = vmatpush1.bf16.msra.mxu0 0
    %466 = vmatprep.subr.bf16.mxu0 0
    %467 = vmatpush1.bf16.msra.mxu0 0
    %468 = vmatprep.subr.bf16.mxu0 0
    %469 = vmatpush1.bf16.msra.mxu0 0
    %470 = vmatprep.subr.bf16.mxu0 0
    %471 = vmatpush1.bf16.msra.mxu0 0
    %472 = vmatprep.subr.bf16.mxu0 0
    %473 = vmatpush1.bf16.msra.mxu0 0
    %474 = vmatprep.subr.bf16.mxu0 0
    %475 = vmatpush1.bf16.msra.mxu0 0
    %476 = vmatprep.subr.bf16.mxu0 0
    %477 = vmatpush1.bf16.msra.mxu0 0
    %478 = vmatprep.subr.bf16.mxu0 0
    %479 = vmatpush1.bf16.msra.mxu0 0
    %480 = vmatprep.subr.bf16.mxu0 0
    %481 = vmatpush1.bf16.msra.mxu0 0
    %482 = vmatprep.subr.bf16.mxu0 0
    %483 = vmatpush1.bf16.msra.mxu0 0
    %484 = vmatprep.subr.bf16.mxu0 0
    %485 = vmatpush1.bf16.msra.mxu0 0
    %486 = vmatprep.subr.bf16.mxu0 0
    %487 = vmatpush1.bf16.msra.mxu0 0
    %488 = vmatprep.subr.bf16.mxu0 0
    %489 = vmatpush1.bf16.msra.mxu0 0
    %490 = vmatprep.mubr.bf16.mxu0 0
    %491 = vmatmul.mubr.bf16.gmra.mrb[0].mxu0 %v413
    %v492 = vpop.f32.mrb[0].mxu0
    %v493 = vadd.f32 %v378, %v492
    %v494 = vpop.f32.mrb[0].mxu0
    %v495 = vadd.f32 %v380, %v494
    %v496 = vpop.f32.mrb[0].mxu0
    %v497 = vadd.f32 %v382, %v496
    %v498 = vpop.f32.mrb[0].mxu0
    %v499 = vadd.f32 %v384, %v498
    %500 = vdwg.mxu0
    %v501 = vld [vmem:[#allocation10] sm:$0xf]
    %v503 = vlaneseq
    %v504 = vshrl.u32 %v503, 7
    %v505 = vsub.s32 0, %v504
    %v506 = vrot.slane %v501, %v505
    %v507 = vlaneseq
    %v508 = vshrl.u32 %v507, 7
    %v509 = vsub.s32 1, %v508
    %v510 = vrot.slane %v501, %v509
    %v511 = vlaneseq
    %v512 = vshrl.u32 %v511, 7
    %v513 = vsub.s32 2, %v512
    %v514 = vrot.slane %v501, %v513
    %v515 = vlaneseq
    %v516 = vshrl.u32 %v515, 7
    %v517 = vsub.s32 3, %v516
    %v518 = vrot.slane %v501, %v517
    %v523 = vadd.f32 %v450, %v506
    %v524 = vadd.f32 %v452, %v510
    %v525 = vadd.f32 %v493, %v514
    %v526 = vadd.f32 %v495, %v518
    %v527 = vadd.f32 %v454, %v506
    %v528 = vadd.f32 %v456, %v510
    %v529 = vadd.f32 %v497, %v514
    %v530 = vadd.f32 %v499, %v518
    %v531 = vsub.f32 0.0, %v523
    %v532 = vsub.f32 0.0, %v527
    %v533 = vmul.f32 %v531, 1.442695
    %v534 = vpow.pop %v533
    %v535 = vmul.f32 %v532, 1.442695
    %v536 = vpow.pop %v535
    %v537 = vadd.f32 %v534, 1.0
    %v538 = vadd.f32 %v536, 1.0
    %v539 = vrcp.pop %v537
    %v540 = vrcp.pop %v538
    %v541 = vsub.f32 0.0, %v524
    %v542 = vsub.f32 0.0, %v528
    %v543 = vmul.f32 %v541, 1.442695
    %v544 = vpow.pop %v543
    %v545 = vmul.f32 %v542, 1.442695
    %v546 = vpow.pop %v545
    %v547 = vadd.f32 %v544, 1.0
    %v548 = vadd.f32 %v546, 1.0
    %v549 = vrcp.pop %v547
    %v550 = vrcp.pop %v548
    %v551 = vtanh.pop %v525
    %v552 = vtanh.pop %v529
    %v553 = vsub.f32 0.0, %v526
    %v554 = vsub.f32 0.0, %v530
    %v555 = vmul.f32 %v553, 1.442695
    %v556 = vpow.pop %v555
    %v557 = vmul.f32 %v554, 1.442695
    %v558 = vpow.pop %v557
    %v559 = vadd.f32 %v556, 1.0
    %v560 = vadd.f32 %v558, 1.0
    %v561 = vrcp.pop %v559
    %v562 = vrcp.pop %v560
    %v563 = vld [vmem:[%s5] sm:$0xff]
    %v564 = vld [vmem:[%s5 + $0x8] sm:$0xff]
    %v565 = vmul.f32 %v563, %v549
    %v566 = vmul.f32 %v564, %v550
    %v567 = vmul.f32 %v539, %v551
    %v568 = vmul.f32 %v540, %v552
    %v569 = vadd.f32 %v565, %v567
    %v570 = vadd.f32 %v566, %v568
    %v571 = vtanh.pop %v569
    %v572 = vtanh.pop %v570
    %v573 = vmul.f32 %v561, %v571
    %v574 = vmul.f32 %v562, %v572
    %v575 = vpack.c.bf16 %v574, %v573
    %v577 = vunpack.c.l.b16 %v575
    %v578 = vunpack.c.h.b16 %v575
    %v579 = vpack.c.b16 %v577, %v577
    %v580 = vpack.c.b16 %v578, %v578
    %583 = vst [vmem:[#allocation11] sm:$0xf] %v579
    %584 = vst [vmem:[#allocation11 + $0x4] sm:$0xf] %v580
    %585 = vst [vmem:[#allocation12] sm:$0xff] %v569
    %586 = vst [vmem:[#allocation12 + $0x8] sm:$0xff] %v570
    // Predicated region
    $region46: #{tpu_custom_call.1} parent=1 // pred_check
      _
    $region47: #{tpu_custom_call.1} parent=1 // pred_check_branch
      %588 = sbr.rel (0) target = $region49
    $region48: #{tpu_custom_call.1} parent=1 // pred_region
      %s590 = ssub.s32 128, 128
      %591 = vsyncadd [#allocation4], %s590
      %s592 = sshll.u32 [#allocation11], 4
      %s593 = int_to_ptr.vmem [resolvable:$true] %s592
      %598 = dma.vmem_to_hbm [thread:$0]  %s593, 128, %s6, [#allocation4], 64, 64, 4
    $region49: #{tpu_custom_call.1} parent=1 // pred_fallthru
      _
    // Predicated region
    $region50: #{tpu_custom_call.1} parent=1 // pred_check
      _
    $region51: #{tpu_custom_call.1} parent=1 // pred_check_branch
      %600 = sbr.rel (0) target = $region53
    $region52: #{tpu_custom_call.1} parent=1 // pred_region
      %s602 = ssub.s32 256, 256
      %603 = vsyncadd [#allocation13], %s602
      %s604 = sshll.u32 [#allocation12], 4
      %s605 = int_to_ptr.vmem [resolvable:$true] %s604
      %610 = dma.vmem_to_hbm [thread:$0]  %s605, 256, %s7, [#allocation13], 128, 128, 8
    $region53: #{tpu_custom_call.1} parent=1 // pred_fallthru
      _
    // Predicated region
    $region54: #{tpu_custom_call.1} parent=1 // pred_check
      _
    $region55: #{tpu_custom_call.1} parent=1 // pred_check_branch
      %612 = sbr.rel (0) target = $region57
    $region56: #{tpu_custom_call.1} parent=1 // pred_region
      %613 = dma.done [#allocation4], 128
    $region57: #{tpu_custom_call.1} parent=1 // pred_fallthru
      _
    // Predicated region
    $region58: #{tpu_custom_call.1} parent=1 // pred_check
      _
    $region59: #{tpu_custom_call.1} parent=1 // pred_check_branch
      %615 = sbr.rel (0) target = $region61
    $region60: #{tpu_custom_call.1} parent=1 // pred_region
      %616 = dma.done [#allocation13], 256
    $region61: #{tpu_custom_call.1} parent=1 // pred_fallthru
      _
    %617 = vsyncpa [#allocation3], 1
    %618 = vsyncpa [#allocation6], 1
    %619 = vsyncpa [#allocation9], 1
    %620 = vsyncpa [#allocation4], 1
    %621 = vsyncpa [#allocation13], 1

</llo_original>
